<compile_context>
chip_gen: v5e
topology: v5e:2x2
jax: 0.10.0
libtpu: 0.0.40
codegen_flags: <defaults>
</compile_context>

<pallas_src>
from functools import partial

import jax
import jax.numpy as jnp
from jax.experimental import pallas as pl
from jax.experimental.pallas import tpu as pltpu

LANES = 128
SUBLANES = 8


def _round_down(x, m):
    return (x // m) * m


def _packed_align(itemsize):
    """Second-minor alignment for a dtype: 8 (f32), 16 (bf16), 32 (int8)."""
    return SUBLANES * max(1, 4 // itemsize)


def _target_bytes_per_step():
    """Per-input, per-step DMA target, tuned per TPU generation."""
    kind = ""
    try:
        kind = jax.devices()[0].device_kind.lower()
    except Exception:
        pass
    if "v5" in kind:
        return 2 << 20      # v5e: stay well under the 16 MiB scoped default
    if "v6" in kind:
        return 4 << 20      # v6e: 16 MiB double-buffered, fits 32 MiB default
    if "v7" in kind or "7x" in kind:
        return 8 << 20      # v7x: needs vmem_limit_bytes raised (we set 48 MiB)
    return 4 << 20          # unknown generation: safe middle ground


def _pick_block_rows(rows, itemsize, align):
    """Pick a block size targeting the per-generation DMA size while keeping
    >= ~4 grid steps (so the pipeline can overlap) and alignment to the
    packed sublane count."""
    target_bytes = _target_bytes_per_step()
    block_rows = max(align, _round_down(target_bytes // (LANES * itemsize), align))
    # Keep at least ~4 grid steps when the tensor is big enough (this also
    # guarantees >= 2 blocks so both v7x TensorCores get work).
    quarter = _round_down(rows // 4, align)
    if quarter >= align:
        block_rows = min(block_rows, quarter)
    # Never exceed the actual row count (rows is a multiple of `align`).
    block_rows = min(block_rows, rows)
    return block_rows


def _l1_partial_sum_kernel(x_ref, y_ref, out_ref, *, valid_rows, block_rows):
    """Write sum over this block of |x - y| as a (1, 8, 128) partial tile."""
    i = pl.program_id(0)

    diff = x_ref[...].astype(jnp.float32) - y_ref[...].astype(jnp.float32)
    ad = jnp.abs(diff)

    def _block_sum(a):
        # (block_rows, 128) -> (block_rows//8, 8, 128); reducing the leading
        # axis is a pure elementwise vreg add chain (VPU only, no XLU work).
        return jnp.sum(
            a.reshape(block_rows // SUBLANES, SUBLANES, LANES), axis=0
        ).reshape(1, SUBLANES, LANES)

    if valid_rows % block_rows != 0:
        last = pl.num_programs(0) - 1

        @pl.when(i != last)
        def _():
            out_ref[...] = _block_sum(ad)

        @pl.when(i == last)
        def _():
            # Only the last block can contain rows past the true extent; OOB
            # reads of the padded block region are unspecified, so zero them.
            row_ids = i * block_rows + jax.lax.broadcasted_iota(
                jnp.int32, ad.shape, 0
            )
            out_ref[...] = _block_sum(jnp.where(row_ids < valid_rows, ad, 0.0))
    else:
        out_ref[...] = _block_sum(ad)


def nafssr_loss(x, y):
    """L1 loss (mean of |x - y|), matching nn.L1Loss() defaults."""
    assert x.shape == y.shape, "x and y must have the same shape"
    n_elems = x.size
    itemsize = jnp.dtype(x.dtype).itemsize
    align = _packed_align(itemsize)

    xf = jnp.ravel(x)
    yf = jnp.ravel(y)

    # The lane-dense 2-D slab needs its row count to be a multiple of the
    # packed sublane count (8 f32 / 16 bf16 / 32 int8).  Typical NCHW tensors
    # already satisfy this (no copy).  Otherwise pad both inputs equally with
    # zeros: |0 - 0| = 0 contributes nothing to the sum.
    slab = align * LANES
    if n_elems % slab != 0:
        pad = slab - (n_elems % slab)
        xf = jnp.pad(xf, (0, pad))
        yf = jnp.pad(yf, (0, pad))

    rows = xf.size // LANES           # multiple of `align`
    x2 = xf.reshape(rows, LANES)
    y2 = yf.reshape(rows, LANES)

    block_rows = _pick_block_rows(rows, itemsize, align)
    num_blocks = pl.cdiv(rows, block_rows)
    grid = (num_blocks,)

    kernel = partial(
        _l1_partial_sum_kernel, valid_rows=rows, block_rows=block_rows
    )

    bytes_in = x2.size * x2.dtype.itemsize + y2.size * y2.dtype.itemsize
    bytes_out = num_blocks * SUBLANES * LANES * 4

    partials = pl.pallas_call(
        kernel,
        out_shape=jax.ShapeDtypeStruct(
            (num_blocks, SUBLANES, LANES), jnp.float32
        ),
        grid_spec=pltpu.PrefetchScalarGridSpec(
            num_scalar_prefetch=0,
            grid=grid,
            in_specs=[
                pl.BlockSpec((block_rows, LANES), lambda i: (i, 0)),
                pl.BlockSpec((block_rows, LANES), lambda i: (i, 0)),
            ],
            out_specs=pl.BlockSpec(
                (1, SUBLANES, LANES), lambda i: (i, 0, 0)
            ),
        ),
        compiler_params=pltpu.CompilerParams(
            # Each step writes its own output block -> no carried state, so
            # the axis is truly parallel (v7x shards it across both TCs).
            dimension_semantics=("parallel",),
            # Large double-buffered tiles (up to ~8 MiB/input/step on v7x)
            # need the scoped-VMEM limit raised; 48 MiB leaves headroom on
            # v7x's 64 MiB physical VMEM and is harmless on v5e/v6e.
            vmem_limit_bytes=48 << 20,
        ),
        cost_estimate=pl.CostEstimate(
            flops=3 * n_elems,            # sub + abs + accumulate
            transcendentals=0,
            bytes_accessed=bytes_in + bytes_out,
        ),
    )(x2, y2)

    total = jnp.sum(partials, dtype=jnp.float32)
    # Match PyTorch L1Loss, which returns the reduction in the input dtype.
    return (total / jnp.float32(n_elems)).astype(x.dtype)


if __name__ == "__main__":
    key = jax.random.PRNGKey(0)
    kx, ky = jax.random.split(key)
    # NCHW, consistent with the PyTorch module's conv-style inputs.
    x = jax.random.normal(kx, (2, 4, 16, 16), dtype=jnp.float32)
    y = jax.random.normal(ky, (2, 4, 16, 16), dtype=jnp.float32)

    loss = nafssr_loss(x, y)
    jax.block_until_ready(loss)

    ref = jnp.mean(jnp.abs(x - y))
    assert jnp.allclose(loss, ref, atol=1e-6, rtol=1e-6), (loss, ref)
    print("KERNEL_OK")
</pallas_src>

<mosaic_0001>
module attributes {stable_mosaic.version = 11 : i64} {
  func.func @_l1_partial_sum_kernel(%arg0: i32, %arg1: memref<16x128xf32, #tpu.memory_space<vmem>>, %arg2: memref<16x128xf32, #tpu.memory_space<vmem>>, %arg3: memref<1x8x128xf32, #tpu.memory_space<vmem>>) attributes {dimension_semantics = [#tpu.dimension_semantics<parallel>], iteration_bounds = array<i64: 1>, scalar_prefetch = 0 : i64, scratch_operands = 0 : i64, tpu.core_type = #tpu.core_type<tc>, window_params = [{transform_indices = @transform_0, window_bounds = array<i64: 16, 128>}, {transform_indices = @transform_1, window_bounds = array<i64: 16, 128>}, {transform_indices = @transform_2, window_bounds = array<i64: 1, 8, 128>}]} {
    %c0 = arith.constant 0 : index
    %c0_0 = arith.constant 0 : index
    %0 = vector.load %arg1[%c0, %c0_0] : memref<16x128xf32, #tpu.memory_space<vmem>>, vector<16x128xf32>
    %c0_1 = arith.constant 0 : index
    %c0_2 = arith.constant 0 : index
    %1 = vector.load %arg2[%c0_1, %c0_2] : memref<16x128xf32, #tpu.memory_space<vmem>>, vector<16x128xf32>
    %2 = arith.subf %0, %1 : vector<16x128xf32>
    %3 = math.absf %2 : vector<16x128xf32>
    %4 = vector.shape_cast %3 : vector<16x128xf32> to vector<2x8x128xf32>
    %cst = arith.constant dense<0.000000e+00> : vector<8x128xf32>
    %5 = vector.multi_reduction <add>, %4, %cst [0] : vector<2x8x128xf32> to vector<8x128xf32>
    %6 = vector.shape_cast %5 : vector<8x128xf32> to vector<1x8x128xf32>
    %c0_3 = arith.constant 0 : index
    %c0_4 = arith.constant 0 : index
    %c0_5 = arith.constant 0 : index
    %7 = vector.load %arg3[%c0_3, %c0_4, %c0_5] : memref<1x8x128xf32, #tpu.memory_space<vmem>>, vector<1x8x128xf32>
    tpu.vector_store %arg3[%c0_3, %c0_4, %c0_5], %6 {strides = array<i32>} : memref<1x8x128xf32, #tpu.memory_space<vmem>>, vector<1x8x128xf32>,
    return
  }
  func.func @transform_0(%arg0: i32) -> (i32, i32) {
    %c0_i32 = arith.constant 0 : i32
    %c0_i32_0 = arith.constant 0 : i32
    return %arg0, %c0_i32 : i32, i32
  }
  func.func @transform_1(%arg0: i32) -> (i32, i32) {
    %c0_i32 = arith.constant 0 : i32
    %c0_i32_0 = arith.constant 0 : i32
    return %arg0, %c0_i32 : i32, i32
  }
  func.func @transform_2(%arg0: i32) -> (i32, i32, i32) {
    %c0_i32 = arith.constant 0 : i32
    %c0_i32_0 = arith.constant 0 : i32
    %c0_i32_1 = arith.constant 0 : i32
    return %arg0, %c0_i32, %c0_i32_0 : i32, i32, i32
  }
}

</mosaic_0001>

<llo_original>
// kernel: tpu_custom_call.1
$region0: #{tpu_custom_call.1}
  #allocation0 [shape = 'u32[]', space=smem, size = 0x4, offset = 0x4, fixed_abs, tag = 'smem constant byte address 0x4 - core index']
  #allocation1 [shape = 'u32[72,128]{1,0:T(1,128)}', space=vmem, size = 0x9000, scoped, tag = 'internal scratch']
  %s0 = inlined_call_operand.hbm [shape: f32[16,128], index: 0, kind: input, shape index: {}]
  %s1 = inlined_call_operand.hbm [shape: f32[16,128], index: 1, kind: input, shape index: {}]
  %s2 = inlined_call_operand.hbm [shape: f32[1,8,128], index: 2, kind: output, shape index: {}]
  %s3 = sld [smem:[#allocation0]]
  $region26: #{tpu_custom_call.1} parent=0
    _
  %s5 = ssub.s32 1, %s3
  %s6 = scalar_select 0, %s5, %s3
  $region1: #{tpu_custom_call.1} parent=0
    #allocation2 [shape = 'u8[8192]{0}', space=vmem, size = 0x2000, scoped, tag = 'input window, operand 0, single buffered']
    #allocation3 [shape = 's32[1]{0}', space=sflag, size = 0x4, scoped, tag = 'scoped memory for tpu_custom_call.1']
    #allocation4 [shape = 's32[1]{0}', space=sflag, size = 0x4, scoped, tag = 'scoped memory for tpu_custom_call.1']
    #allocation5 [shape = 'u8[8192]{0}', space=vmem, size = 0x2000, scoped, tag = 'input window, operand 1, single buffered']
    #allocation6 [shape = 's32[1]{0}', space=sflag, size = 0x4, scoped, tag = 'scoped memory for tpu_custom_call.1']
    #allocation7 [shape = 'u8[4096]{0}', space=vmem, size = 0x1000, scoped, tag = 'output window, operand 0, single buffered']
    %7 = vsyncpa [#allocation3], 0
    %8 = vsyncpa [#allocation6], 0
    %9 = vsyncpa [#allocation4], 0
    // Predicated region
    $region2: #{tpu_custom_call.1} parent=1 // pred_check
      _
    $region3: #{tpu_custom_call.1} parent=1 // pred_check_branch
      %11 = sbr.rel (0) target = $region5
    $region4: #{tpu_custom_call.1} parent=1 // pred_region
      %13 = vsyncadd [#allocation3], 0
      %s14 = sshll.u32 %s0, 4
      %s15 = int_to_ptr.hbm [resolvable:$true] %s14
      %s16 = sshll.u32 [#allocation2], 4
      %s17 = int_to_ptr.vmem [resolvable:$true] %s16
      %22 = dma.hbm_to_vmem [thread:$0]  %s15, 256, %s17, [#allocation3], 128, 128, 8
    $region5: #{tpu_custom_call.1} parent=1 // pred_fallthru
      _
    // Predicated region
    $region6: #{tpu_custom_call.1} parent=1 // pred_check
      _
    $region7: #{tpu_custom_call.1} parent=1 // pred_check_branch
      %24 = sbr.rel (0) target = $region9
    $region8: #{tpu_custom_call.1} parent=1 // pred_region
      %26 = vsyncadd [#allocation6], 0
      %s27 = sshll.u32 %s1, 4
      %s28 = int_to_ptr.hbm [resolvable:$true] %s27
      %s29 = sshll.u32 [#allocation5], 4
      %s30 = int_to_ptr.vmem [resolvable:$true] %s29
      %35 = dma.hbm_to_vmem [thread:$0]  %s28, 256, %s30, [#allocation6], 128, 128, 8
    $region9: #{tpu_custom_call.1} parent=1 // pred_fallthru
      _
    // Predicated region
    $region10: #{tpu_custom_call.1} parent=1 // pred_check
      _
    $region11: #{tpu_custom_call.1} parent=1 // pred_check_branch
      %37 = sbr.rel (0) target = $region13
    $region12: #{tpu_custom_call.1} parent=1 // pred_region
      %39 = dma.done [#allocation3], 256
    $region13: #{tpu_custom_call.1} parent=1 // pred_fallthru
      _
    // Predicated region
    $region14: #{tpu_custom_call.1} parent=1 // pred_check
      _
    $region15: #{tpu_custom_call.1} parent=1 // pred_check_branch
      %41 = sbr.rel (0) target = $region17
    $region16: #{tpu_custom_call.1} parent=1 // pred_region
      %43 = dma.done [#allocation6], 256
    $region17: #{tpu_custom_call.1} parent=1 // pred_fallthru
      _
    %v44 = vld [vmem:[#allocation2] sm:$0xff]
    %v45 = vld [vmem:[#allocation2 + $0x8] sm:$0xff]
    %v46 = vld [vmem:[#allocation5] sm:$0xff]
    %v47 = vld [vmem:[#allocation5 + $0x8] sm:$0xff]
    %v48 = vsub.f32 %v44, %v46
    %v49 = vsub.f32 %v45, %v47
    %v50 = vand.u32 2147483647, %v48
    %v51 = vand.u32 2147483647, %v49
    %v52 = vadd.f32 %v50, %v51
    %53 = vst [vmem:[#allocation7] sm:$0xff] %v52
    // Predicated region
    $region18: #{tpu_custom_call.1} parent=1 // pred_check
      _
    $region19: #{tpu_custom_call.1} parent=1 // pred_check_branch
      %55 = sbr.rel (0) target = $region21
    $region20: #{tpu_custom_call.1} parent=1 // pred_region
      %57 = vsyncadd [#allocation4], 0
      %s59 = sshll.u32 [#allocation7], 4
      %s60 = int_to_ptr.vmem [resolvable:$true] %s59
      %s61 = sshll.u32 %s2, 4
      %s62 = int_to_ptr.hbm [resolvable:$true] %s61
      %64 = dma.vmem_to_hbm [thread:$0]  %s60, 128, %s62, [#allocation4]
    $region21: #{tpu_custom_call.1} parent=1 // pred_fallthru
      _
    // Predicated region
    $region22: #{tpu_custom_call.1} parent=1 // pred_check
      _
    $region23: #{tpu_custom_call.1} parent=1 // pred_check_branch
      %66 = sbr.rel (0) target = $region25
    $region24: #{tpu_custom_call.1} parent=1 // pred_region
      %68 = dma.done [#allocation4], 128
    $region25: #{tpu_custom_call.1} parent=1 // pred_fallthru
      _
    %69 = vsyncpa [#allocation3], 1
    %70 = vsyncpa [#allocation6], 1
    %71 = vsyncpa [#allocation4], 1

</llo_original>
